<compile_context>
chip_gen: v7x
topology: tpu7x:2x2x1
jax: 0.10.0
libtpu: 0.0.40
codegen_flags: <defaults>
</compile_context>

<pallas_src>
import functools

import numpy as np
import jax
import jax.numpy as jnp
from jax.experimental import pallas as pl
from jax.experimental.pallas import tpu as pltpu


# ---------------------------------------------------------------------------
# Tile selection: size by bytes, keep dual-TC (v7x) busy, avoid padding.
# ---------------------------------------------------------------------------
_TARGET_TILE_BYTES = 4 << 20      # ~4 MiB f32 output tile
_MAX_LANE_TILE = 8192             # 32 KiB per row; multiple of 256
_LANE_ALIGN = 256                 # keeps tN even (lane parity) and 128-dense
_SUBLANE_ALIGN = 8


def _round_up(v, m):
    return -(-v // m) * m


def _round_down(v, m):
    return (v // m) * m


def _choose_tiles(B, L, itemsize):
    """Pick (tB, tN).  Block dims are either full array dims (any value) or
    aligned to (8, 128+) so the (8, 128) BlockSpec constraint always holds;
    non-divisible shapes fall to Pallas' masked boundary blocks."""
    tN = L if L <= _MAX_LANE_TILE else _MAX_LANE_TILE
    rows = max(_SUBLANE_ALIGN, _TARGET_TILE_BYTES // max(1, tN * itemsize))
    tB = B if B <= rows else _round_down(rows, _SUBLANE_ALIGN)
    # v7x dual-TC: keep >= 2 grid steps along a parallel axis for non-trivial
    # problems (otherwise the second TensorCore idles).
    if (pl.cdiv(B, tB) == 1 and pl.cdiv(L, tN) == 1
            and B * L * itemsize > (512 << 10)):
        if B >= 2 * _SUBLANE_ALIGN:
            tB = _round_up(pl.cdiv(B, 2), _SUBLANE_ALIGN)
        elif L >= 2 * _LANE_ALIGN:
            tN = _round_up(pl.cdiv(L, 2), _LANE_ALIGN)
    return tB, tN


# ---------------------------------------------------------------------------
# Kernels
# ---------------------------------------------------------------------------
def _shared_rotation_kernel(x_ref, coef_ref, out_ref):
    """Shared-samples path.
       x_ref:    (tB, 2) f32 VMEM.
       coef_ref: (2, tN) f32 VMEM, lane-interleaved rotation coefficients:
                 row 0 multiplies x0, row 1 multiplies x1.
       out_ref:  (tB, tN); lane l -> (sample l//2, component l%2)."""
    out_ref[...] = (x_ref[:, 0:1] * coef_ref[0:1, :]
                    + x_ref[:, 1:2] * coef_ref[1:2, :]).astype(out_ref.dtype)


def _independent_rotation_kernel(x_ref, rads_ref, out_ref):
    """Independent-samples path.
       x_ref:    (tB, 2) f32 VMEM.
       rads_ref: (tB, tN) f32 VMEM, lane-interleaved repeated rads
                 (lane l -> rads[b, l//2]).
       out_ref:  (tB, tN); lane l -> (sample l//2, component l%2)."""
    r = rads_ref[...]
    c = jnp.cos(r)
    s = jnp.sin(r)
    # Block-local lane parity is globally correct: tN is always even (it is
    # either the full 2N, or a multiple of 128/256).
    lane = jax.lax.broadcasted_iota(jnp.int32, r.shape, 1)
    even = (lane & 1) == 0            # component-0 lanes
    a0 = jnp.where(even, c, s)        # coefficient of x[:, 0]
    a1 = jnp.where(even, -s, c)       # coefficient of x[:, 1]
    out_ref[...] = (x_ref[:, 0:1] * a0 + x_ref[:, 1:2] * a1).astype(out_ref.dtype)


# ---------------------------------------------------------------------------
# Wrapper
# ---------------------------------------------------------------------------
@functools.partial(jax.jit, static_argnames=("out_dtype",))
def rotation_layer(x, samples, rot_factor, out_dtype=None):
    """x: (B, 2); samples: (n_samples,) shared or (B, n_samples) independent;
       rot_factor: scalar (or shape-(1,) parameter).
       Returns (B, n_samples, 2) matching the PyTorch einsum.
       out_dtype=jnp.bfloat16 halves the dominant HBM write stream (math stays f32)."""
    B = x.shape[0]
    N = samples.shape[-1]
    L = 2 * N
    independent = samples.ndim == 2
    out_dtype = x.dtype if out_dtype is None else jnp.dtype(out_dtype)
    out_item = jnp.dtype(out_dtype).itemsize

    x_f = x.astype(jnp.float32)
    rot = jnp.asarray(rot_factor, jnp.float32).reshape(())
    samples_f = samples.astype(jnp.float32)

    tB, tN = _choose_tiles(B, L, 4)
    grid = (pl.cdiv(B, tB), pl.cdiv(L, tN))   # lane axis last: x not re-DMA'd per lane tile

    x_spec = pl.BlockSpec((tB, 2), lambda i, j: (i, 0))      # resident across j
    out_spec = pl.BlockSpec((tB, tN), lambda i, j: (i, j))
    cparams = pltpu.CompilerParams(
        dimension_semantics=("parallel", "parallel"),
        vmem_limit_bytes=32 * 1024 * 1024,
    )

    if independent:
        # Per-(batch, sample) rads, lane-interleaved (each rad repeated twice so
        # adjacent lanes hold the two output components of one sample).  The
        # pi*rot scale is fused into this same elementwise pass.
        # TODO(synk): this still materializes a (B, 2N) array in HBM (one extra
        # read+write pass vs. feeding (B, N)); Mosaic has no robust half->full
        # lane-interleave primitive to do the repeat in-kernel.
        rads_rep = jnp.repeat(samples_f * (jnp.float32(np.pi) * rot), 2, axis=1)
        out = pl.pallas_call(
            _independent_rotation_kernel,
            out_shape=jax.ShapeDtypeStruct((B, L), out_dtype),
            grid=grid,
            in_specs=[x_spec, pl.BlockSpec((tB, tN), lambda i, j: (i, j))],
            out_specs=out_spec,
            compiler_params=cparams,
            cost_estimate=pl.CostEstimate(
                flops=7 * B * L,
                transcendentals=2 * B * L,
                bytes_accessed=4 * (2 * B + B * L) + out_item * B * L,
            ),
        )(x_f, rads_rep)
    else:
        # Shared samples: precompute the two interleaved coefficient rows once
        # (tiny (2, 2N) array) -> kernel is 2 muls + 1 add per output element.
        rads = samples_f * (jnp.float32(np.pi) * rot)            # (N,)
        c, s = jnp.cos(rads), jnp.sin(rads)
        coef = jnp.stack(
            [jnp.stack([c, s], axis=-1).reshape(-1),              # [c0,s0,c1,s1,...]
             jnp.stack([-s, c], axis=-1).reshape(-1)], axis=0)    # [-s0,c0,-s1,c1,...]
        out = pl.pallas_call(
            _shared_rotation_kernel,
            out_shape=jax.ShapeDtypeStruct((B, L), out_dtype),
            grid=grid,
            in_specs=[x_spec, pl.BlockSpec((2, tN), lambda i, j: (0, j))],
            out_specs=out_spec,
            compiler_params=cparams,
            cost_estimate=pl.CostEstimate(
                flops=3 * B * L,
                transcendentals=0,
                bytes_accessed=4 * (2 * B + 2 * L) + out_item * B * L,
            ),
        )(x_f, coef)

    # (B, 2N) -> (B, N, 2): plain row-major reshape, no slicing.
    return out.reshape(B, N, 2)


def deterministic_linspace(n_samples):
    """Matches the PyTorch `_linspace` buffer used when deterministic=True."""
    if n_samples % 2 == 0:
        start = -(n_samples // 2 - 1) / (n_samples // 2)
        end = 1.0
    else:
        start = -(1.0 - 1.0 / n_samples)
        end = 1.0 - 1.0 / n_samples
    return jnp.linspace(start, end, n_samples, dtype=jnp.float32)


def _reference(x, samples, rot_factor):
    """Pure-JAX reference mirroring the PyTorch forward."""
    rads = samples * np.pi * rot_factor
    c, s = jnp.cos(rads), jnp.sin(rads)
    if samples.ndim == 1:
        mats = jnp.stack((jnp.stack((c, -s), 0), jnp.stack((s, c), 0)), 0)   # (2,2,N)
        mats = jnp.transpose(mats, (2, 0, 1))                                # (N, j, i)
        return jnp.einsum('cji,bi->bcj', mats, x)
    mats = jnp.stack((jnp.stack((c, -s), 0), jnp.stack((s, c), 0)), 0)       # (2,2,B,N)
    mats = jnp.transpose(mats, (2, 3, 0, 1))                                 # (B,N,j,i)
    return jnp.einsum('bcji,bi->bcj', mats, x)


if __name__ == "__main__":
    key = jax.random.PRNGKey(0)
    k_x, k_s, k_si, k_x2, k_s2 = jax.random.split(key, 5)

    B = 8
    n_samples = 32
    rot_factor = jnp.float32(0.5)   # module default is 0.0 (degenerate); use 0.5

    x = jax.random.normal(k_x, (B, 2), dtype=jnp.float32)

    # default path: deterministic=False, independent=False -> shared U[-1,1] samples
    samples = jax.random.uniform(k_s, (n_samples,), minval=-1.0, maxval=1.0,
                                 dtype=jnp.float32)
    out = jax.block_until_ready(rotation_layer(x, samples, rot_factor))
    assert out.shape == (B, n_samples, 2)
    np.testing.assert_allclose(np.asarray(out),
                               np.asarray(_reference(x, samples, rot_factor)),
                               rtol=1e-5, atol=1e-5)

    # independent=True path: per-batch samples (B, n_samples)
    samples_ind = jax.random.uniform(k_si, (B, n_samples), minval=-1.0, maxval=1.0,
                                     dtype=jnp.float32)
    out_ind = jax.block_until_ready(rotation_layer(x, samples_ind, rot_factor))
    np.testing.assert_allclose(np.asarray(out_ind),
                               np.asarray(_reference(x, samples_ind, rot_factor)),
                               rtol=1e-5, atol=1e-5)

    # deterministic=True path: fixed linspace samples through the same kernel
    samples_det = deterministic_linspace(n_samples)
    out_det = jax.block_until_ready(rotation_layer(x, samples_det, rot_factor))
    np.testing.assert_allclose(np.asarray(out_det),
                               np.asarray(_reference(x, samples_det, rot_factor)),
                               rtol=1e-5, atol=1e-5)

    # TPU-unfriendly shape: exercises the multi-step grid (batch split for
    # dual-TC) and the ragged/masked boundary blocks (B=33 not a tile multiple,
    # 2N=4000 not a multiple of 128).
    B2, n2 = 33, 2000
    x2 = jax.random.normal(k_x2, (B2, 2), dtype=jnp.float32)
    s2 = jax.random.uniform(k_s2, (B2, n2), minval=-1.0, maxval=1.0,
                            dtype=jnp.float32)
    out2 = jax.block_until_ready(rotation_layer(x2, s2, rot_factor))
    np.testing.assert_allclose(np.asarray(out2),
                               np.asarray(_reference(x2, s2, rot_factor)),
                               rtol=1e-5, atol=1e-5)

    print("KERNEL_OK")
</pallas_src>

<mosaic_0001>
module attributes {stable_mosaic.version = 11 : i64} {
  func.func @_shared_rotation_kernel(%arg0: i32, %arg1: i32, %arg2: memref<8x2xf32, #tpu.memory_space<vmem>>, %arg3: memref<2x64xf32, #tpu.memory_space<vmem>>, %arg4: memref<8x64xf32, #tpu.memory_space<vmem>>) attributes {dimension_semantics = [#tpu.dimension_semantics<parallel>, #tpu.dimension_semantics<parallel>], iteration_bounds = array<i64: 1, 1>, scalar_prefetch = 0 : i64, scratch_operands = 0 : i64, tpu.core_type = #tpu.core_type<tc>, window_params = [{transform_indices = @transform_0, window_bounds = array<i64: 8, 2>}, {transform_indices = @transform_1, window_bounds = array<i64: 2, 64>}, {transform_indices = @transform_2, window_bounds = array<i64: 8, 64>}]} {
    %c0 = arith.constant 0 : index
    %c0_0 = arith.constant 0 : index
    %0 = vector.load %arg2[%c0, %c0_0] : memref<8x2xf32, #tpu.memory_space<vmem>>, vector<8x1xf32>
    %c0_1 = arith.constant 0 : index
    %c0_2 = arith.constant 0 : index
    %1 = vector.load %arg3[%c0_1, %c0_2] : memref<2x64xf32, #tpu.memory_space<vmem>>, vector<1x64xf32>
    %2 = vector.broadcast %0 : vector<8x1xf32> to vector<8x64xf32>
    %3 = vector.broadcast %1 : vector<1x64xf32> to vector<8x64xf32>
    %4 = arith.mulf %2, %3 : vector<8x64xf32>
    %c0_3 = arith.constant 0 : index
    %c1 = arith.constant 1 : index
    %5 = vector.load %arg2[%c0_3, %c1] : memref<8x2xf32, #tpu.memory_space<vmem>>, vector<8x1xf32>
    %c1_4 = arith.constant 1 : index
    %c0_5 = arith.constant 0 : index
    %6 = vector.load %arg3[%c1_4, %c0_5] : memref<2x64xf32, #tpu.memory_space<vmem>>, vector<1x64xf32>
    %7 = vector.broadcast %5 : vector<8x1xf32> to vector<8x64xf32>
    %8 = vector.broadcast %6 : vector<1x64xf32> to vector<8x64xf32>
    %9 = arith.mulf %7, %8 : vector<8x64xf32>
    %10 = arith.addf %4, %9 : vector<8x64xf32>
    %c0_6 = arith.constant 0 : index
    %c0_7 = arith.constant 0 : index
    %11 = vector.load %arg4[%c0_6, %c0_7] : memref<8x64xf32, #tpu.memory_space<vmem>>, vector<8x64xf32>
    tpu.vector_store %arg4[%c0_6, %c0_7], %10 {strides = array<i32>} : memref<8x64xf32, #tpu.memory_space<vmem>>, vector<8x64xf32>,
    return
  }
  func.func @transform_0(%arg0: i32, %arg1: i32) -> (i32, i32) {
    %c0_i32 = arith.constant 0 : i32
    %c0_i32_0 = arith.constant 0 : i32
    return %arg0, %c0_i32 : i32, i32
  }
  func.func @transform_1(%arg0: i32, %arg1: i32) -> (i32, i32) {
    %c0_i32 = arith.constant 0 : i32
    %c0_i32_0 = arith.constant 0 : i32
    return %c0_i32, %arg1 : i32, i32
  }
  func.func @transform_2(%arg0: i32, %arg1: i32) -> (i32, i32) {
    %c0_i32 = arith.constant 0 : i32
    return %arg0, %arg1 : i32, i32
  }
}

</mosaic_0001>

<llo_original>
// kernel: rotation_layer.1
$region0: #{rotation_layer.1}
  #allocation0 [shape = 'u32[]', space=smem, size = 0x4, offset = 0x4, fixed_abs, tag = 'smem constant byte address 0x4 - core index']
  #allocation1 [shape = 'u32[144,128]{1,0:T(1,128)}', space=vmem, size = 0x12000, scoped, tag = 'internal scratch']
  %s0 = inlined_call_operand.vmem [shape: f32[8,2], index: 0, kind: input, shape index: {}]
  %s1 = inlined_call_operand.vmem [shape: f32[2,64], index: 1, kind: input, shape index: {}]
  %s2 = inlined_call_operand.vmem [shape: f32[8,64], index: 2, kind: output, shape index: {}]
  %s3 = sld [smem:[#allocation0]]
  $region18: #{rotation_layer.1} parent=0
    _
  %s5 = ssub.s32 1, %s3
  %s6 = scalar_select 0, %s5, %s3
  // Predicated region
  $region2: #{rotation_layer.1} parent=0 // pred_check
    _
  $region3: #{rotation_layer.1} parent=0 // pred_check_branch
    %8 = sbr.rel (0) target = $region5
  $region4: #{rotation_layer.1} parent=0 // pred_region
    _
  $region5: #{rotation_layer.1} parent=0 // pred_fallthru
    _
  // Predicated region
  $region6: #{rotation_layer.1} parent=0 // pred_check
    _
  $region7: #{rotation_layer.1} parent=0 // pred_check_branch
    %10 = sbr.rel (0) target = $region9
  $region8: #{rotation_layer.1} parent=0 // pred_region
    _
  $region9: #{rotation_layer.1} parent=0 // pred_fallthru
    _
  %v11 = vld [vmem:[%s0] sm:$0xff]
  %v12 = vld [vmem:[%s1] sm:$0x1]
  %14 = vset.pattern.permute.xlu0 0
  %15 = vperm.xlu0 %14, %v11
  %v16 = vpop.permute.xlu0 %15
  %v18 = vlaneseq
  %v19 = vshrl.u32 %v18, 7
  %v20 = vsub.s32 0, %v19
  %v21 = vrot.slane %v12, %v20
  %v22 = vmul.f32 %v16, %v21
  %v23 = vld [vmem:[%s1 + $0x1] sm:$0x1]
  %24 = vset.pattern.permute.xlu0 1
  %25 = vperm.xlu0 %24, %v11
  %v26 = vpop.permute.xlu0 %25
  %v28 = vlaneseq
  %v29 = vshrl.u32 %v28, 7
  %v30 = vsub.s32 0, %v29
  %v31 = vrot.slane %v23, %v30
  %v32 = vmul.f32 %v26, %v31
  %v33 = vadd.f32 %v22, %v32
  %vm34 = vcmask 523264
  %35 = vst.msk [vmem:[%s2] sm:$0xff] %vm34, %v33
  // Predicated region
  $region10: #{rotation_layer.1} parent=0 // pred_check
    _
  $region11: #{rotation_layer.1} parent=0 // pred_check_branch
    %37 = sbr.rel (0) target = $region13
  $region12: #{rotation_layer.1} parent=0 // pred_region
    _
  $region13: #{rotation_layer.1} parent=0 // pred_fallthru
    _
  // Predicated region
  $region14: #{rotation_layer.1} parent=0 // pred_check
    _
  $region15: #{rotation_layer.1} parent=0 // pred_check_branch
    %39 = sbr.rel (0) target = $region17
  $region16: #{rotation_layer.1} parent=0 // pred_region
    _
  $region17: #{rotation_layer.1} parent=0 // pred_fallthru
    _

</llo_original>
